<compile_context>
chip_gen: v6e
topology: v6e:2x2x1
jax: 0.10.0
libtpu: 0.0.40
codegen_flags: <defaults>
</compile_context>

<pallas_src>
import numpy as np

import jax
import jax.numpy as jnp
from jax.experimental import pallas as pl
from jax.experimental.pallas import tpu as pltpu

# ---------------- static hyper-parameters (small, forward-consistent) ----------
VOCAB_SIZE = 50
NUM_TOKENS = VOCAB_SIZE + 2                  # 52 (vocab + 2, as in nn.Embedding)
EMBEDDING_DIM = 15
ADDITIONAL_KERNEL = 1
F = EMBEDDING_DIM + ADDITIONAL_KERNEL        # conv kernel width == full feature width
LEN_SENTENCE = 12
N_GRAM = 5
T = LEN_SENTENCE - (N_GRAM - 1)              # conv output length (=8)
TP = T // 2                                  # after AvgPool1d(kernel=2) (=4)
CHANNELS = 4
TC = T * CHANNELS                            # flattened conv length (=32)
X2_SIZE = 1
FLAT_DIM = CHANNELS * TP                     # 16
BOTTLENECK = FLAT_DIM + X2_SIZE              # 17
FC_DIM = 32
NUM_LABELS = 7
BATCH = 8
PADDING_IDX = 1

# -------- fused conv-stage contraction layout (single bf16 matmul) -------------
K_VOC = 64                                   # K rows per sentence position (52 vocab + pad)
CAP_LANE = K_VOC - 1                         # lane 63 of each position carries the cap ratio
K_TOTAL = LEN_SENTENCE * K_VOC               # 768 = total contraction depth

# -------- small f32 weight pack (rows x 32 lanes), 8-row aligned sections ------
OFF_W1EFF = 0                                # (TC, FC_DIM)  fc1 with AvgPool folded in
OFF_W2 = 32                                  # (FC_DIM, 32)  fc2 (cols 0..6 used)
OFF_W1OTH = 64                               # (X2, FC_DIM)  fc1 rows for other_features
OFF_BC = 72                                  # (1, TC)       conv bias tiled
OFF_B1 = 80                                  # (1, FC_DIM)
OFF_B2 = 88                                  # (1, 32)       fc2 bias (cols 0..6 used)
WPACK_ROWS = 96


# ------------------------------- Pallas kernel ---------------------------------
def _net_kernel(sent_ref, cap_ref, other_ref, a_ref, w_ref, o_ref, lhs_ref):
    sent = sent_ref[...]                      # (B, L)  int32 token ids
    cap = cap_ref[...]                        # (B, L)  f32 capital ratios
    other = other_ref[...]                    # (B, X2) f32 extra features

    # --- Build the fused LHS (B, 768) in VMEM scratch.  For position l, lanes
    #     l*64 .. l*64+51 hold the token one-hot, lane l*64+63 holds the cap
    #     ratio (the matching RHS row holds the cap-ratio conv tap). ----------
    vocab_iota = jax.lax.broadcasted_iota(jnp.int32, (BATCH, K_VOC), 1)  # hoisted
    cap_col = vocab_iota == CAP_LANE                                     # hoisted
    for l in range(LEN_SENTENCE):                                        # static unroll (12)
        onehot = (vocab_iota == sent[:, l:l + 1]).astype(jnp.float32)    # (B, 64)
        piece = jnp.where(cap_col, cap[:, l:l + 1], onehot)              # (B, 64)
        lhs_ref[:, l * K_VOC:(l + 1) * K_VOC] = piece

    # --- ONE bf16 MXU contraction replaces embedding lookup + Conv2d. ---------
    lhs = lhs_ref[...].astype(jnp.bfloat16)                              # exact for 0/1
    conv = jnp.dot(lhs, a_ref[...], preferred_element_type=jnp.float32)  # (B, T*C) f32

    # --- small f32 weights (static, sublane-aligned slices) -------------------
    w1_eff = w_ref[OFF_W1EFF:OFF_W1EFF + TC, :]          # (T*C, FC_DIM), pool folded in
    w2 = w_ref[OFF_W2:OFF_W2 + FC_DIM, :]                # (FC_DIM, 32), cols 0..6 used
    w1_oth = w_ref[OFF_W1OTH:OFF_W1OTH + X2_SIZE, :]     # (X2, FC_DIM)
    bc = w_ref[OFF_BC:OFF_BC + 1, :]                     # (1, T*C)
    b1 = w_ref[OFF_B1:OFF_B1 + 1, :]                     # (1, FC_DIM)
    b2 = w_ref[OFF_B2:OFF_B2 + 1, :]                     # (1, 32)

    conv = jnp.maximum(conv + bc, 0.0)                   # conv bias + ReLU
    # TODO(synk): Dropout(p=0.3) is stochastic; eval-mode (identity) semantics used.

    # --- AvgPool1d folded into fc1 (w1_eff pre-permuted and scaled by 0.5). ----
    h = jnp.dot(conv, w1_eff, preferred_element_type=jnp.float32)        # (B, FC)
    if X2_SIZE == 1:
        h = h + other * w1_oth                                           # rank-1 update (VPU)
    else:
        h = h + jnp.dot(other, w1_oth, preferred_element_type=jnp.float32)
    h = jnp.maximum(h + b1, 0.0)                                         # ReLU

    logits = jnp.dot(h, w2, preferred_element_type=jnp.float32) + b2     # (B, 32)
    probs = 1.0 / (1.0 + jnp.exp(-logits))                               # sigmoid (EUP)
    o_ref[...] = probs[:, 0:NUM_LABELS]


# ------------------------- one-time host-side weight prep ----------------------
def prepare_params(params):
    """Pre-contract embedding/conv into one packed bf16 RHS, fold AvgPool into fc1."""
    emb = np.asarray(params["embedding"], dtype=np.float64)           # (V+2, E)
    convw = np.asarray(params["conv_w"], dtype=np.float64)[:, 0]      # (C, n, F)
    convb = np.asarray(params["conv_b"], dtype=np.float64)            # (C,)
    fc1w = np.asarray(params["fc1_w"], dtype=np.float64)              # (FC_DIM, 17)
    fc1b = np.asarray(params["fc1_b"], dtype=np.float64)              # (FC_DIM,)
    fc2w = np.asarray(params["fc2_w"], dtype=np.float64)              # (7, FC_DIM)
    fc2b = np.asarray(params["fc2_b"], dtype=np.float64)              # (7,)

    # Fused conv RHS: a_pack[l*64 + v, t*C + c] = emb[v, :E] . conv_w[c, l-t, :E]
    #                 a_pack[l*64 + 63, t*C + c] = conv_w[c, l-t, E]   (cap tap)
    a_pack = np.zeros((K_TOTAL, TC), dtype=np.float64)
    for t in range(T):
        for dt in range(N_GRAM):
            l = t + dt
            for c in range(CHANNELS):
                k = t * CHANNELS + c
                a_pack[l * K_VOC:l * K_VOC + NUM_TOKENS, k] += emb @ convw[c, dt, :EMBEDDING_DIM]
                a_pack[l * K_VOC + CAP_LANE, k] += convw[c, dt, EMBEDDING_DIM]

    # Fold AvgPool1d(kernel=2) into fc1, honoring torch's .view(-1, C*TP) order.
    w1_eff = np.zeros((TC, FC_DIM), dtype=np.float64)
    for t in range(T):
        for c in range(CHANNELS):
            w1_eff[t * CHANNELS + c, :] = 0.5 * fc1w[:, c * TP + t // 2]

    w_pack = np.zeros((WPACK_ROWS, TC), dtype=np.float64)
    w_pack[OFF_W1EFF:OFF_W1EFF + TC, :FC_DIM] = w1_eff
    w_pack[OFF_W2:OFF_W2 + FC_DIM, :NUM_LABELS] = fc2w.T
    w_pack[OFF_W1OTH:OFF_W1OTH + X2_SIZE, :FC_DIM] = fc1w[:, FLAT_DIM:].T
    w_pack[OFF_BC, :TC] = np.tile(convb, T)          # bc[t*C+c] = conv_b[c]
    w_pack[OFF_B1, :FC_DIM] = fc1b
    w_pack[OFF_B2, :NUM_LABELS] = fc2b

    a_pack = jnp.asarray(a_pack.astype(np.float32)).astype(jnp.bfloat16)  # big DMA -> bf16
    w_pack = jnp.asarray(w_pack.astype(np.float32))                       # fc weights stay f32
    return a_pack, w_pack


# ------------------------------- wrapper (glue) ---------------------------------
def make_net_forward(params):
    a_pack, w_pack = prepare_params(params)   # one-time weight prep, zero per-call cost

    def _full(shape):
        n = len(shape)
        return pl.BlockSpec(shape, lambda i, _n=n: (0,) * _n)

    # NOTE: at serving batch >> 8, tile the batch axis instead:
    #   grid=(pl.cdiv(B, 256),), block the three activation inputs + the output
    #   on the batch dim, keep a_pack/w_pack index_maps constant so the weights
    #   are DMA'd once and stay VMEM-resident, mark the axis "parallel" so
    #   v7x's two TensorCores split the work, and build the one-hot LHS in
    #   <=64-row sub-blocks to stay within the 64-vreg file.
    kernel_fn = pl.pallas_call(
        _net_kernel,
        out_shape=jax.ShapeDtypeStruct((BATCH, NUM_LABELS), jnp.float32),
        grid=(1,),
        in_specs=[
            _full((BATCH, LEN_SENTENCE)),     # sentence (int32)
            _full((BATCH, LEN_SENTENCE)),     # cap_ratio (f32)
            _full((BATCH, X2_SIZE)),          # other_features (f32)
            _full((K_TOTAL, TC)),             # fused conv RHS (bf16)
            _full((WPACK_ROWS, TC)),          # packed fc weights / biases (f32)
        ],
        out_specs=pl.BlockSpec((BATCH, NUM_LABELS), lambda i: (0, 0)),
        scratch_shapes=[pltpu.VMEM((BATCH, K_TOTAL), jnp.float32)],
        compiler_params=pltpu.CompilerParams(dimension_semantics=("arbitrary",)),
    )

    @jax.jit
    def forward(sentence, cap_ratio, other_features):
        return kernel_fn(sentence, cap_ratio, other_features, a_pack, w_pack)

    return forward


# --------------------------- pure-JAX reference (check) -------------------------
def reference_forward(sentence, cap_ratio, other_features, params):
    image = jnp.take(params["embedding"], sentence, axis=0)
    new_image = jnp.concatenate([image, cap_ratio[..., None]], axis=2)   # (B, L, F)
    w = params["conv_w"][:, 0]                                           # (C, n, F)
    outs = []
    for t in range(T):
        win = new_image[:, t:t + N_GRAM, :]                              # (B, n, F)
        outs.append(jnp.einsum("bnf,cnf->bc", win, w))
    conv = jnp.stack(outs, axis=2) + params["conv_b"][None, :, None]     # (B, C, T)
    conv = jnp.maximum(conv, 0.0)
    pooled = 0.5 * (conv[:, :, 0::2] + conv[:, :, 1::2])                 # (B, C, TP)
    flat = pooled.reshape(sentence.shape[0], FLAT_DIM)
    feat = jnp.concatenate([flat, other_features], axis=1)
    h = jnp.maximum(feat @ params["fc1_w"].T + params["fc1_b"], 0.0)
    logits = h @ params["fc2_w"].T + params["fc2_b"]
    return jax.nn.sigmoid(logits)


# ------------------------------------ main --------------------------------------
if __name__ == "__main__":
    key = jax.random.PRNGKey(0)
    ks = jax.random.split(key, 10)

    emb = jax.random.normal(ks[0], (NUM_TOKENS, EMBEDDING_DIM), jnp.float32) * 0.1
    emb = emb.at[PADDING_IDX].set(0.0)                    # padding_idx row is zero
    params = {
        "embedding": emb,
        "conv_w": jax.random.normal(ks[1], (CHANNELS, 1, N_GRAM, F), jnp.float32) * 0.1,
        "conv_b": jax.random.normal(ks[2], (CHANNELS,), jnp.float32) * 0.1,
        "fc1_w": jax.random.normal(ks[3], (FC_DIM, BOTTLENECK), jnp.float32) * 0.1,
        "fc1_b": jax.random.normal(ks[4], (FC_DIM,), jnp.float32) * 0.1,
        "fc2_w": jax.random.normal(ks[5], (NUM_LABELS, FC_DIM), jnp.float32) * 0.1,
        "fc2_b": jax.random.normal(ks[6], (NUM_LABELS,), jnp.float32) * 0.1,
    }

    sentence = jax.random.randint(ks[7], (BATCH, LEN_SENTENCE), 0, NUM_TOKENS,
                                  dtype=jnp.int32)
    cap_ratio = jax.random.uniform(ks[8], (BATCH, LEN_SENTENCE), jnp.float32)
    other_features = jax.random.uniform(ks[9], (BATCH, X2_SIZE), jnp.float32)

    net_forward = make_net_forward(params)
    out = net_forward(sentence, cap_ratio, other_features)
    out = jax.block_until_ready(out)

    ref = reference_forward(sentence, cap_ratio, other_features, params)
    assert out.shape == (BATCH, NUM_LABELS)
    # bf16 storage of the pre-contracted conv weights gives ~1e-3-relative conv-stage
    # rounding; fc weights are f32, so post-sigmoid error stays well under 5e-3.
    assert bool(jnp.allclose(out, ref, atol=5e-3, rtol=5e-3))

    print("KERNEL_OK")
</pallas_src>

<mosaic_0001>
module attributes {stable_mosaic.version = 11 : i64} {
  func.func @_net_kernel(%arg0: i32, %arg1: memref<8x12xi32, #tpu.memory_space<vmem>>, %arg2: memref<8x12xf32, #tpu.memory_space<vmem>>, %arg3: memref<8x1xf32, #tpu.memory_space<vmem>>, %arg4: memref<768x32xbf16, #tpu.memory_space<vmem>>, %arg5: memref<96x32xf32, #tpu.memory_space<vmem>>, %arg6: memref<8x7xf32, #tpu.memory_space<vmem>>, %arg7: memref<8x768xf32, #tpu.memory_space<vmem>>) attributes {dimension_semantics = [#tpu.dimension_semantics<arbitrary>], iteration_bounds = array<i64: 1>, scalar_prefetch = 0 : i64, scratch_operands = 1 : i64, tpu.core_type = #tpu.core_type<tc>, window_params = [{pipeline_mode = #tpu.pipeline_mode<synchronous>, transform_indices = @transform_0, window_bounds = array<i64: 8, 12>}, {pipeline_mode = #tpu.pipeline_mode<synchronous>, transform_indices = @transform_1, window_bounds = array<i64: 8, 12>}, {pipeline_mode = #tpu.pipeline_mode<synchronous>, transform_indices = @transform_2, window_bounds = array<i64: 8, 1>}, {pipeline_mode = #tpu.pipeline_mode<synchronous>, transform_indices = @transform_3, window_bounds = array<i64: 768, 32>}, {pipeline_mode = #tpu.pipeline_mode<synchronous>, transform_indices = @transform_4, window_bounds = array<i64: 96, 32>}, {pipeline_mode = #tpu.pipeline_mode<synchronous>, transform_indices = @transform_5, window_bounds = array<i64: 8, 7>}]} {
    %c0 = arith.constant 0 : index
    %c0_0 = arith.constant 0 : index
    %0 = vector.load %arg1[%c0, %c0_0] : memref<8x12xi32, #tpu.memory_space<vmem>>, vector<8x12xi32>
    %c0_1 = arith.constant 0 : index
    %c0_2 = arith.constant 0 : index
    %1 = vector.load %arg2[%c0_1, %c0_2] : memref<8x12xf32, #tpu.memory_space<vmem>>, vector<8x12xf32>
    %c0_3 = arith.constant 0 : index
    %c0_4 = arith.constant 0 : index
    %2 = vector.load %arg3[%c0_3, %c0_4] : memref<8x1xf32, #tpu.memory_space<vmem>>, vector<8x1xf32>
    %3 = tpu.iota {dimensions = array<i32: 1>} : vector<8x64xi32>
    %c63_i32 = arith.constant 63 : i32
    %4 = vector.broadcast %c63_i32 : i32 to vector<8x64xi32>
    %5 = arith.cmpi eq, %3, %4 : vector<8x64xi32>
    %6 = vector.extract_strided_slice %0 {offsets = [0, 0], sizes = [8, 1], strides = [1, 1]} : vector<8x12xi32> to vector<8x1xi32>
    %7 = vector.broadcast %6 : vector<8x1xi32> to vector<8x64xi32>
    %8 = arith.cmpi eq, %3, %7 : vector<8x64xi32>
    %9 = arith.extui %8 : vector<8x64xi1> to vector<8x64xi32>
    %10 = arith.sitofp %9 : vector<8x64xi32> to vector<8x64xf32>
    %11 = vector.extract_strided_slice %1 {offsets = [0, 0], sizes = [8, 1], strides = [1, 1]} : vector<8x12xf32> to vector<8x1xf32>
    %12 = vector.shape_cast %11 : vector<8x1xf32> to vector<8x1xf32>
    %13 = vector.broadcast %12 : vector<8x1xf32> to vector<8x64xf32>
    %14 = arith.select %5, %13, %10 : vector<8x64xi1>, vector<8x64xf32>
    %c0_5 = arith.constant 0 : index
    %c0_6 = arith.constant 0 : index
    %15 = vector.load %arg7[%c0_5, %c0_6] : memref<8x768xf32, #tpu.memory_space<vmem>>, vector<8x64xf32>
    tpu.vector_store %arg7[%c0_5, %c0_6], %14 {strides = array<i32>} : memref<8x768xf32, #tpu.memory_space<vmem>>, vector<8x64xf32>,
    %16 = vector.extract_strided_slice %0 {offsets = [0, 1], sizes = [8, 1], strides = [1, 1]} : vector<8x12xi32> to vector<8x1xi32>
    %17 = vector.broadcast %16 : vector<8x1xi32> to vector<8x64xi32>
    %18 = arith.cmpi eq, %3, %17 : vector<8x64xi32>
    %19 = arith.extui %18 : vector<8x64xi1> to vector<8x64xi32>
    %20 = arith.sitofp %19 : vector<8x64xi32> to vector<8x64xf32>
    %21 = vector.extract_strided_slice %1 {offsets = [0, 1], sizes = [8, 1], strides = [1, 1]} : vector<8x12xf32> to vector<8x1xf32>
    %22 = vector.shape_cast %21 : vector<8x1xf32> to vector<8x1xf32>
    %23 = vector.broadcast %22 : vector<8x1xf32> to vector<8x64xf32>
    %24 = arith.select %5, %23, %20 : vector<8x64xi1>, vector<8x64xf32>
    %c0_7 = arith.constant 0 : index
    %c64 = arith.constant 64 : index
    %25 = vector.load %arg7[%c0_7, %c64] : memref<8x768xf32, #tpu.memory_space<vmem>>, vector<8x64xf32>
    tpu.vector_store %arg7[%c0_7, %c64], %24 {strides = array<i32>} : memref<8x768xf32, #tpu.memory_space<vmem>>, vector<8x64xf32>,
    %26 = vector.extract_strided_slice %0 {offsets = [0, 2], sizes = [8, 1], strides = [1, 1]} : vector<8x12xi32> to vector<8x1xi32>
    %27 = vector.broadcast %26 : vector<8x1xi32> to vector<8x64xi32>
    %28 = arith.cmpi eq, %3, %27 : vector<8x64xi32>
    %29 = arith.extui %28 : vector<8x64xi1> to vector<8x64xi32>
    %30 = arith.sitofp %29 : vector<8x64xi32> to vector<8x64xf32>
    %31 = vector.extract_strided_slice %1 {offsets = [0, 2], sizes = [8, 1], strides = [1, 1]} : vector<8x12xf32> to vector<8x1xf32>
    %32 = vector.shape_cast %31 : vector<8x1xf32> to vector<8x1xf32>
    %33 = vector.broadcast %32 : vector<8x1xf32> to vector<8x64xf32>
    %34 = arith.select %5, %33, %30 : vector<8x64xi1>, vector<8x64xf32>
    %c0_8 = arith.constant 0 : index
    %c128 = arith.constant 128 : index
    %35 = vector.load %arg7[%c0_8, %c128] : memref<8x768xf32, #tpu.memory_space<vmem>>, vector<8x64xf32>
    tpu.vector_store %arg7[%c0_8, %c128], %34 {strides = array<i32>} : memref<8x768xf32, #tpu.memory_space<vmem>>, vector<8x64xf32>,
    %36 = vector.extract_strided_slice %0 {offsets = [0, 3], sizes = [8, 1], strides = [1, 1]} : vector<8x12xi32> to vector<8x1xi32>
    %37 = vector.broadcast %36 : vector<8x1xi32> to vector<8x64xi32>
    %38 = arith.cmpi eq, %3, %37 : vector<8x64xi32>
    %39 = arith.extui %38 : vector<8x64xi1> to vector<8x64xi32>
    %40 = arith.sitofp %39 : vector<8x64xi32> to vector<8x64xf32>
    %41 = vector.extract_strided_slice %1 {offsets = [0, 3], sizes = [8, 1], strides = [1, 1]} : vector<8x12xf32> to vector<8x1xf32>
    %42 = vector.shape_cast %41 : vector<8x1xf32> to vector<8x1xf32>
    %43 = vector.broadcast %42 : vector<8x1xf32> to vector<8x64xf32>
    %44 = arith.select %5, %43, %40 : vector<8x64xi1>, vector<8x64xf32>
    %c0_9 = arith.constant 0 : index
    %c192 = arith.constant 192 : index
    %45 = vector.load %arg7[%c0_9, %c192] : memref<8x768xf32, #tpu.memory_space<vmem>>, vector<8x64xf32>
    tpu.vector_store %arg7[%c0_9, %c192], %44 {strides = array<i32>} : memref<8x768xf32, #tpu.memory_space<vmem>>, vector<8x64xf32>,
    %46 = vector.extract_strided_slice %0 {offsets = [0, 4], sizes = [8, 1], strides = [1, 1]} : vector<8x12xi32> to vector<8x1xi32>
    %47 = vector.broadcast %46 : vector<8x1xi32> to vector<8x64xi32>
    %48 = arith.cmpi eq, %3, %47 : vector<8x64xi32>
    %49 = arith.extui %48 : vector<8x64xi1> to vector<8x64xi32>
    %50 = arith.sitofp %49 : vector<8x64xi32> to vector<8x64xf32>
    %51 = vector.extract_strided_slice %1 {offsets = [0, 4], sizes = [8, 1], strides = [1, 1]} : vector<8x12xf32> to vector<8x1xf32>
    %52 = vector.shape_cast %51 : vector<8x1xf32> to vector<8x1xf32>
    %53 = vector.broadcast %52 : vector<8x1xf32> to vector<8x64xf32>
    %54 = arith.select %5, %53, %50 : vector<8x64xi1>, vector<8x64xf32>
    %c0_10 = arith.constant 0 : index
    %c256 = arith.constant 256 : index
    %55 = vector.load %arg7[%c0_10, %c256] : memref<8x768xf32, #tpu.memory_space<vmem>>, vector<8x64xf32>
    tpu.vector_store %arg7[%c0_10, %c256], %54 {strides = array<i32>} : memref<8x768xf32, #tpu.memory_space<vmem>>, vector<8x64xf32>,
    %56 = vector.extract_strided_slice %0 {offsets = [0, 5], sizes = [8, 1], strides = [1, 1]} : vector<8x12xi32> to vector<8x1xi32>
    %57 = vector.broadcast %56 : vector<8x1xi32> to vector<8x64xi32>
    %58 = arith.cmpi eq, %3, %57 : vector<8x64xi32>
    %59 = arith.extui %58 : vector<8x64xi1> to vector<8x64xi32>
    %60 = arith.sitofp %59 : vector<8x64xi32> to vector<8x64xf32>
    %61 = vector.extract_strided_slice %1 {offsets = [0, 5], sizes = [8, 1], strides = [1, 1]} : vector<8x12xf32> to vector<8x1xf32>
    %62 = vector.shape_cast %61 : vector<8x1xf32> to vector<8x1xf32>
    %63 = vector.broadcast %62 : vector<8x1xf32> to vector<8x64xf32>
    %64 = arith.select %5, %63, %60 : vector<8x64xi1>, vector<8x64xf32>
    %c0_11 = arith.constant 0 : index
    %c320 = arith.constant 320 : index
    %65 = vector.load %arg7[%c0_11, %c320] : memref<8x768xf32, #tpu.memory_space<vmem>>, vector<8x64xf32>
    tpu.vector_store %arg7[%c0_11, %c320], %64 {strides = array<i32>} : memref<8x768xf32, #tpu.memory_space<vmem>>, vector<8x64xf32>,
    %66 = vector.extract_strided_slice %0 {offsets = [0, 6], sizes = [8, 1], strides = [1, 1]} : vector<8x12xi32> to vector<8x1xi32>
    %67 = vector.broadcast %66 : vector<8x1xi32> to vector<8x64xi32>
    %68 = arith.cmpi eq, %3, %67 : vector<8x64xi32>
    %69 = arith.extui %68 : vector<8x64xi1> to vector<8x64xi32>
    %70 = arith.sitofp %69 : vector<8x64xi32> to vector<8x64xf32>
    %71 = vector.extract_strided_slice %1 {offsets = [0, 6], sizes = [8, 1], strides = [1, 1]} : vector<8x12xf32> to vector<8x1xf32>
    %72 = vector.shape_cast %71 : vector<8x1xf32> to vector<8x1xf32>
    %73 = vector.broadcast %72 : vector<8x1xf32> to vector<8x64xf32>
    %74 = arith.select %5, %73, %70 : vector<8x64xi1>, vector<8x64xf32>
    %c0_12 = arith.constant 0 : index
    %c384 = arith.constant 384 : index
    %75 = vector.load %arg7[%c0_12, %c384] : memref<8x768xf32, #tpu.memory_space<vmem>>, vector<8x64xf32>
    tpu.vector_store %arg7[%c0_12, %c384], %74 {strides = array<i32>} : memref<8x768xf32, #tpu.memory_space<vmem>>, vector<8x64xf32>,
    %76 = vector.extract_strided_slice %0 {offsets = [0, 7], sizes = [8, 1], strides = [1, 1]} : vector<8x12xi32> to vector<8x1xi32>
    %77 = vector.broadcast %76 : vector<8x1xi32> to vector<8x64xi32>
    %78 = arith.cmpi eq, %3, %77 : vector<8x64xi32>
    %79 = arith.extui %78 : vector<8x64xi1> to vector<8x64xi32>
    %80 = arith.sitofp %79 : vector<8x64xi32> to vector<8x64xf32>
    %81 = vector.extract_strided_slice %1 {offsets = [0, 7], sizes = [8, 1], strides = [1, 1]} : vector<8x12xf32> to vector<8x1xf32>
    %82 = vector.shape_cast %81 : vector<8x1xf32> to vector<8x1xf32>
    %83 = vector.broadcast %82 : vector<8x1xf32> to vector<8x64xf32>
    %84 = arith.select %5, %83, %80 : vector<8x64xi1>, vector<8x64xf32>
    %c0_13 = arith.constant 0 : index
    %c448 = arith.constant 448 : index
    %85 = vector.load %arg7[%c0_13, %c448] : memref<8x768xf32, #tpu.memory_space<vmem>>, vector<8x64xf32>
    tpu.vector_store %arg7[%c0_13, %c448], %84 {strides = array<i32>} : memref<8x768xf32, #tpu.memory_space<vmem>>, vector<8x64xf32>,
    %86 = vector.extract_strided_slice %0 {offsets = [0, 8], sizes = [8, 1], strides = [1, 1]} : vector<8x12xi32> to vector<8x1xi32>
    %87 = vector.broadcast %86 : vector<8x1xi32> to vector<8x64xi32>
    %88 = arith.cmpi eq, %3, %87 : vector<8x64xi32>
    %89 = arith.extui %88 : vector<8x64xi1> to vector<8x64xi32>
    %90 = arith.sitofp %89 : vector<8x64xi32> to vector<8x64xf32>
    %91 = vector.extract_strided_slice %1 {offsets = [0, 8], sizes = [8, 1], strides = [1, 1]} : vector<8x12xf32> to vector<8x1xf32>
    %92 = vector.shape_cast %91 : vector<8x1xf32> to vector<8x1xf32>
    %93 = vector.broadcast %92 : vector<8x1xf32> to vector<8x64xf32>
    %94 = arith.select %5, %93, %90 : vector<8x64xi1>, vector<8x64xf32>
    %c0_14 = arith.constant 0 : index
    %c512 = arith.constant 512 : index
    %95 = vector.load %arg7[%c0_14, %c512] : memref<8x768xf32, #tpu.memory_space<vmem>>, vector<8x64xf32>
    tpu.vector_store %arg7[%c0_14, %c512], %94 {strides = array<i32>} : memref<8x768xf32, #tpu.memory_space<vmem>>, vector<8x64xf32>,
    %96 = vector.extract_strided_slice %0 {offsets = [0, 9], sizes = [8, 1], strides = [1, 1]} : vector<8x12xi32> to vector<8x1xi32>
    %97 = vector.broadcast %96 : vector<8x1xi32> to vector<8x64xi32>
    %98 = arith.cmpi eq, %3, %97 : vector<8x64xi32>
    %99 = arith.extui %98 : vector<8x64xi1> to vector<8x64xi32>
    %100 = arith.sitofp %99 : vector<8x64xi32> to vector<8x64xf32>
    %101 = vector.extract_strided_slice %1 {offsets = [0, 9], sizes = [8, 1], strides = [1, 1]} : vector<8x12xf32> to vector<8x1xf32>
    %102 = vector.shape_cast %101 : vector<8x1xf32> to vector<8x1xf32>
    %103 = vector.broadcast %102 : vector<8x1xf32> to vector<8x64xf32>
    %104 = arith.select %5, %103, %100 : vector<8x64xi1>, vector<8x64xf32>
    %c0_15 = arith.constant 0 : index
    %c576 = arith.constant 576 : index
    %105 = vector.load %arg7[%c0_15, %c576] : memref<8x768xf32, #tpu.memory_space<vmem>>, vector<8x64xf32>
    tpu.vector_store %arg7[%c0_15, %c576], %104 {strides = array<i32>} : memref<8x768xf32, #tpu.memory_space<vmem>>, vector<8x64xf32>,
    %106 = vector.extract_strided_slice %0 {offsets = [0, 10], sizes = [8, 1], strides = [1, 1]} : vector<8x12xi32> to vector<8x1xi32>
    %107 = vector.broadcast %106 : vector<8x1xi32> to vector<8x64xi32>
    %108 = arith.cmpi eq, %3, %107 : vector<8x64xi32>
    %109 = arith.extui %108 : vector<8x64xi1> to vector<8x64xi32>
    %110 = arith.sitofp %109 : vector<8x64xi32> to vector<8x64xf32>
    %111 = vector.extract_strided_slice %1 {offsets = [0, 10], sizes = [8, 1], strides = [1, 1]} : vector<8x12xf32> to vector<8x1xf32>
    %112 = vector.shape_cast %111 : vector<8x1xf32> to vector<8x1xf32>
    %113 = vector.broadcast %112 : vector<8x1xf32> to vector<8x64xf32>
    %114 = arith.select %5, %113, %110 : vector<8x64xi1>, vector<8x64xf32>
    %c0_16 = arith.constant 0 : index
    %c640 = arith.constant 640 : index
    %115 = vector.load %arg7[%c0_16, %c640] : memref<8x768xf32, #tpu.memory_space<vmem>>, vector<8x64xf32>
    tpu.vector_store %arg7[%c0_16, %c640], %114 {strides = array<i32>} : memref<8x768xf32, #tpu.memory_space<vmem>>, vector<8x64xf32>,
    %116 = vector.extract_strided_slice %0 {offsets = [0, 11], sizes = [8, 1], strides = [1, 1]} : vector<8x12xi32> to vector<8x1xi32>
    %117 = vector.broadcast %116 : vector<8x1xi32> to vector<8x64xi32>
    %118 = arith.cmpi eq, %3, %117 : vector<8x64xi32>
    %119 = arith.extui %118 : vector<8x64xi1> to vector<8x64xi32>
    %120 = arith.sitofp %119 : vector<8x64xi32> to vector<8x64xf32>
    %121 = vector.extract_strided_slice %1 {offsets = [0, 11], sizes = [8, 1], strides = [1, 1]} : vector<8x12xf32> to vector<8x1xf32>
    %122 = vector.shape_cast %121 : vector<8x1xf32> to vector<8x1xf32>
    %123 = vector.broadcast %122 : vector<8x1xf32> to vector<8x64xf32>
    %124 = arith.select %5, %123, %120 : vector<8x64xi1>, vector<8x64xf32>
    %c0_17 = arith.constant 0 : index
    %c704 = arith.constant 704 : index
    %125 = vector.load %arg7[%c0_17, %c704] : memref<8x768xf32, #tpu.memory_space<vmem>>, vector<8x64xf32>
    tpu.vector_store %arg7[%c0_17, %c704], %124 {strides = array<i32>} : memref<8x768xf32, #tpu.memory_space<vmem>>, vector<8x64xf32>,
    %c0_18 = arith.constant 0 : index
    %c0_19 = arith.constant 0 : index
    %126 = vector.load %arg7[%c0_18, %c0_19] : memref<8x768xf32, #tpu.memory_space<vmem>>, vector<8x768xf32>
    %127 = arith.truncf %126 : vector<8x768xf32> to vector<8x768xbf16>
    %c0_20 = arith.constant 0 : index
    %c0_21 = arith.constant 0 : index
    %128 = vector.load %arg4[%c0_20, %c0_21] : memref<768x32xbf16, #tpu.memory_space<vmem>>, vector<768x32xbf16>
    %cst = arith.constant dense<0.000000e+00> : vector<8x32xf32>
    %129 = tpu.matmul %127, %128, %cst {dimension_numbers = #tpu.dot_dimension_numbers<[1], [0], [0], [1], [0, 0, 1, 1], [], []>} : vector<8x768xbf16>, vector<768x32xbf16>, vector<8x32xf32> -> vector<8x32xf32>
    %c0_22 = arith.constant 0 : index
    %c0_23 = arith.constant 0 : index
    %130 = vector.load %arg5[%c0_22, %c0_23] : memref<96x32xf32, #tpu.memory_space<vmem>>, vector<32x32xf32>
    %c32 = arith.constant 32 : index
    %c0_24 = arith.constant 0 : index
    %131 = vector.load %arg5[%c32, %c0_24] : memref<96x32xf32, #tpu.memory_space<vmem>>, vector<32x32xf32>
    %c64_25 = arith.constant 64 : index
    %c0_26 = arith.constant 0 : index
    %132 = vector.load %arg5[%c64_25, %c0_26] : memref<96x32xf32, #tpu.memory_space<vmem>>, vector<1x32xf32>
    %c72 = arith.constant 72 : index
    %c0_27 = arith.constant 0 : index
    %133 = vector.load %arg5[%c72, %c0_27] : memref<96x32xf32, #tpu.memory_space<vmem>>, vector<1x32xf32>
    %c80 = arith.constant 80 : index
    %c0_28 = arith.constant 0 : index
    %134 = vector.load %arg5[%c80, %c0_28] : memref<96x32xf32, #tpu.memory_space<vmem>>, vector<1x32xf32>
    %c88 = arith.constant 88 : index
    %c0_29 = arith.constant 0 : index
    %135 = vector.load %arg5[%c88, %c0_29] : memref<96x32xf32, #tpu.memory_space<vmem>>, vector<1x32xf32>
    %136 = vector.broadcast %133 : vector<1x32xf32> to vector<8x32xf32>
    %137 = arith.addf %129, %136 : vector<8x32xf32>
    %cst_30 = arith.constant 0.000000e+00 : f32
    %138 = vector.broadcast %cst_30 : f32 to vector<8x32xf32>
    %139 = arith.maximumf %137, %138 : vector<8x32xf32>
    %cst_31 = arith.constant dense<0.000000e+00> : vector<8x32xf32>
    %140 = tpu.matmul %139, %130, %cst_31 {dimension_numbers = #tpu.dot_dimension_numbers<[1], [0], [0], [1], [0, 0, 1, 1], [], []>} : vector<8x32xf32>, vector<32x32xf32>, vector<8x32xf32> -> vector<8x32xf32>
    %141 = vector.broadcast %2 : vector<8x1xf32> to vector<8x32xf32>
    %142 = vector.broadcast %132 : vector<1x32xf32> to vector<8x32xf32>
    %143 = arith.mulf %141, %142 : vector<8x32xf32>
    %144 = arith.addf %140, %143 : vector<8x32xf32>
    %145 = vector.broadcast %134 : vector<1x32xf32> to vector<8x32xf32>
    %146 = arith.addf %144, %145 : vector<8x32xf32>
    %cst_32 = arith.constant 0.000000e+00 : f32
    %147 = vector.broadcast %cst_32 : f32 to vector<8x32xf32>
    %148 = arith.maximumf %146, %147 : vector<8x32xf32>
    %cst_33 = arith.constant dense<0.000000e+00> : vector<8x32xf32>
    %149 = tpu.matmul %148, %131, %cst_33 {dimension_numbers = #tpu.dot_dimension_numbers<[1], [0], [0], [1], [0, 0, 1, 1], [], []>} : vector<8x32xf32>, vector<32x32xf32>, vector<8x32xf32> -> vector<8x32xf32>
    %150 = vector.broadcast %135 : vector<1x32xf32> to vector<8x32xf32>
    %151 = arith.addf %149, %150 : vector<8x32xf32>
    %cst_34 = arith.constant 0.000000e+00 : f32
    %152 = vector.broadcast %cst_34 : f32 to vector<8x32xf32>
    %153 = arith.subf %152, %151 : vector<8x32xf32>
    %154 = math.exp %153 : vector<8x32xf32>
    %cst_35 = arith.constant 1.000000e+00 : f32
    %155 = vector.broadcast %cst_35 : f32 to vector<8x32xf32>
    %156 = arith.addf %155, %154 : vector<8x32xf32>
    %cst_36 = arith.constant 1.000000e+00 : f32
    %157 = vector.broadcast %cst_36 : f32 to vector<8x32xf32>
    %158 = arith.divf %157, %156 : vector<8x32xf32>
    %159 = vector.extract_strided_slice %158 {offsets = [0, 0], sizes = [8, 7], strides = [1, 1]} : vector<8x32xf32> to vector<8x7xf32>
    %c0_37 = arith.constant 0 : index
    %c0_38 = arith.constant 0 : index
    %160 = vector.load %arg6[%c0_37, %c0_38] : memref<8x7xf32, #tpu.memory_space<vmem>>, vector<8x7xf32>
    tpu.vector_store %arg6[%c0_37, %c0_38], %159 {strides = array<i32>} : memref<8x7xf32, #tpu.memory_space<vmem>>, vector<8x7xf32>,
    return
  }
  func.func @transform_0(%arg0: i32) -> (i32, i32) {
    %c0_i32 = arith.constant 0 : i32
    %c0_i32_0 = arith.constant 0 : i32
    %c0_i32_1 = arith.constant 0 : i32
    return %c0_i32, %c0_i32_0 : i32, i32
  }
  func.func @transform_1(%arg0: i32) -> (i32, i32) {
    %c0_i32 = arith.constant 0 : i32
    %c0_i32_0 = arith.constant 0 : i32
    %c0_i32_1 = arith.constant 0 : i32
    return %c0_i32, %c0_i32_0 : i32, i32
  }
  func.func @transform_2(%arg0: i32) -> (i32, i32) {
    %c0_i32 = arith.constant 0 : i32
    %c0_i32_0 = arith.constant 0 : i32
    %c0_i32_1 = arith.constant 0 : i32
    return %c0_i32, %c0_i32_0 : i32, i32
  }
  func.func @transform_3(%arg0: i32) -> (i32, i32) {
    %c0_i32 = arith.constant 0 : i32
    %c0_i32_0 = arith.constant 0 : i32
    %c0_i32_1 = arith.constant 0 : i32
    return %c0_i32, %c0_i32_0 : i32, i32
  }
  func.func @transform_4(%arg0: i32) -> (i32, i32) {
    %c0_i32 = arith.constant 0 : i32
    %c0_i32_0 = arith.constant 0 : i32
    %c0_i32_1 = arith.constant 0 : i32
    return %c0_i32, %c0_i32_0 : i32, i32
  }
  func.func @transform_5(%arg0: i32) -> (i32, i32) {
    %c0_i32 = arith.constant 0 : i32
    %c0_i32_0 = arith.constant 0 : i32
    %c0_i32_1 = arith.constant 0 : i32
    return %c0_i32, %c0_i32_0 : i32, i32
  }
}

</mosaic_0001>

<llo_original>
// kernel: forward.1
$region0: #{forward.1}
  #allocation0 [shape = 'u32[]', space=smem, size = 0x4, offset = 0x4, fixed_abs, tag = 'smem constant byte address 0x4 - core index']
  #allocation1 [shape = 'u32[144,128]{1,0:T(1,128)}', space=vmem, size = 0x12000, scoped, tag = 'internal scratch']
  #allocation2 [shape = 'f32[8,768]{1,0:T(8,128)}', space=vmem, size = 0x6000, scoped, tag = 'scratch operand']
  %s0 = inlined_call_operand.vmem [shape: s32[8,12], index: 0, kind: input, shape index: {}]
  %s1 = inlined_call_operand.hbm [shape: f32[8,12], index: 1, kind: input, shape index: {}]
  %s2 = inlined_call_operand.vmem [shape: f32[8,1], index: 2, kind: input, shape index: {}]
  %s3 = inlined_call_operand.hbm [shape: bf16[768,32], index: 3, kind: input, shape index: {}]
  %s4 = inlined_call_operand.hbm [shape: f32[96,32], index: 4, kind: input, shape index: {}]
  %s5 = inlined_call_operand.hbm [shape: f32[8,7], index: 5, kind: output, shape index: {}]
  %s6 = sld [smem:[#allocation0]]
  $region42: #{forward.1} parent=0
    _
  %s8 = ssub.s32 1, %s6
  %s9 = scalar_select 0, %s8, %s6
  $region1: #{forward.1} parent=0
    #allocation3 [shape = 'u8[4096]{0}', space=vmem, size = 0x1000, scoped, tag = 'input window, operand 1, single buffered']
    #allocation4 [shape = 's32[1]{0}', space=sflag, size = 0x4, scoped, tag = 'scoped memory for forward.1']
    #allocation5 [shape = 's32[1]{0}', space=sflag, size = 0x4, scoped, tag = 'scoped memory for forward.1']
    #allocation6 [shape = 'u8[196608]{0}', space=vmem, size = 0x30000, scoped, tag = 'input window, operand 3, single buffered']
    #allocation7 [shape = 's32[1]{0}', space=sflag, size = 0x4, scoped, tag = 'scoped memory for forward.1']
    #allocation8 [shape = 'u8[49152]{0}', space=vmem, size = 0xc000, scoped, tag = 'input window, operand 4, single buffered']
    #allocation9 [shape = 'u8[4096]{0}', space=vmem, size = 0x1000, scoped, tag = 'output window, operand 0, single buffered']
    %10 = vsyncpa [#allocation4], 0
    %11 = vsyncpa [#allocation7], 0
    %12 = vsyncpa [#allocation5], 0
    // Predicated region
    $region2: #{forward.1} parent=1 // pred_check
      _
    $region3: #{forward.1} parent=1 // pred_check_branch
      %14 = sbr.rel (0) target = $region5
    $region4: #{forward.1} parent=1 // pred_region
      _
    $region5: #{forward.1} parent=1 // pred_fallthru
      _
    // Predicated region
    $region6: #{forward.1} parent=1 // pred_check
      _
    $region7: #{forward.1} parent=1 // pred_check_branch
      %16 = sbr.rel (0) target = $region9
    $region8: #{forward.1} parent=1 // pred_region
      %s18 = ssub.s32 128, 128
      %19 = vsyncadd [#allocation4], %s18
      %s21 = sshll.u32 [#allocation3], 4
      %s22 = int_to_ptr.vmem [resolvable:$true] %s21
      %24 = dma.hbm_to_vmem [thread:$0]  %s1, 128, %s22, [#allocation4]
    $region9: #{forward.1} parent=1 // pred_fallthru
      _
    // Predicated region
    $region10: #{forward.1} parent=1 // pred_check
      _
    $region11: #{forward.1} parent=1 // pred_check_branch
      %26 = sbr.rel (0) target = $region13
    $region12: #{forward.1} parent=1 // pred_region
      _
    $region13: #{forward.1} parent=1 // pred_fallthru
      _
    // Predicated region
    $region14: #{forward.1} parent=1 // pred_check
      _
    $region15: #{forward.1} parent=1 // pred_check_branch
      %28 = sbr.rel (0) target = $region17
    $region16: #{forward.1} parent=1 // pred_region
      %s30 = ssub.s32 6144, 6144
      %31 = vsyncadd [#allocation7], %s30
      %s32 = sshll.u32 [#allocation6], 4
      %s33 = int_to_ptr.vmem [resolvable:$true] %s32
      %38 = dma.hbm_to_vmem [thread:$0]  %s3, 6144, %s33, [#allocation7], 64, 64, 4
    $region17: #{forward.1} parent=1 // pred_fallthru
      _
    // Predicated region
    $region18: #{forward.1} parent=1 // pred_check
      _
    $region19: #{forward.1} parent=1 // pred_check_branch
      %40 = sbr.rel (0) target = $region21
    $region20: #{forward.1} parent=1 // pred_region
      %s42 = ssub.s32 1536, 1536
      %43 = vsyncadd [#allocation7], %s42
      %s44 = sshll.u32 [#allocation8], 4
      %s45 = int_to_ptr.vmem [resolvable:$true] %s44
      %50 = dma.hbm_to_vmem [thread:$0]  %s4, 1536, %s45, [#allocation7], 128, 128, 8
    $region21: #{forward.1} parent=1 // pred_fallthru
      _
    // Predicated region
    $region22: #{forward.1} parent=1 // pred_check
      _
    $region23: #{forward.1} parent=1 // pred_check_branch
      %52 = sbr.rel (0) target = $region25
    $region24: #{forward.1} parent=1 // pred_region
      %53 = dma.done [#allocation4], 128
    $region25: #{forward.1} parent=1 // pred_fallthru
      _
    // Predicated region
    $region26: #{forward.1} parent=1 // pred_check
      _
    $region27: #{forward.1} parent=1 // pred_check_branch
      %55 = sbr.rel (0) target = $region29
    $region28: #{forward.1} parent=1 // pred_region
      %56 = dma.done [#allocation7], 6144
    $region29: #{forward.1} parent=1 // pred_fallthru
      _
    // Predicated region
    $region30: #{forward.1} parent=1 // pred_check
      _
    $region31: #{forward.1} parent=1 // pred_check_branch
      %58 = sbr.rel (0) target = $region33
    $region32: #{forward.1} parent=1 // pred_region
      %59 = dma.done [#allocation7], 1536
    $region33: #{forward.1} parent=1 // pred_fallthru
      _
    %v61 = vld [vmem:[%s0] sm:$0xff]
    %v62 = vld [vmem:[#allocation3] sm:$0xff]
    %v63 = vld [vmem:[%s2] sm:$0xff]
    %v64 = vlaneseq
    %v65 = vand.u32 %v64, 127
    %vm66 = vcmp.eq.s32.totalorder %v65, 63
    %67 = vset.pattern.permute.xlu0 0
    %68 = vperm.xlu0 %67, %v61
    %v69 = vpop.permute.xlu0 %68
    %vm70 = vcmp.eq.s32.totalorder %v65, %v69
    %v71 = vsel %vm70, 1, 0
    %v72 = vcvt.s32.f32 %v71
    %74 = vset.pattern.permute.xlu0 0
    %75 = vperm.xlu0 %74, %v62
    %v76 = vpop.permute.xlu0 %75
    %v78 = vsel %vm66, %v76, %v72
    %vm79 = vcmask 523264
    %80 = vst.msk [vmem:[#allocation2] sm:$0xff] %vm79, %v78
    %81 = vset.pattern.permute.xlu0 1
    %82 = vperm.xlu0 %81, %v61
    %v83 = vpop.permute.xlu0 %82
    %vm84 = vcmp.eq.s32.totalorder %v65, %v83
    %v85 = vsel %vm84, 1, 0
    %v86 = vcvt.s32.f32 %v85
    %87 = vset.pattern.permute.xlu0 1
    %88 = vperm.xlu0 %87, %v62
    %v89 = vpop.permute.xlu0 %88
    %v91 = vsel %vm66, %v89, %v86
    %93 = vrot.lane.b32.xlu0 %v91, 64
    %v94 = vpop.permute.xlu0 %93
    %vm96 = vcmask 1048064
    %97 = vst.msk [vmem:[#allocation2] sm:$0xff] %vm96, %v94
    %98 = vset.pattern.permute.xlu0 2
    %99 = vperm.xlu0 %98, %v61
    %v100 = vpop.permute.xlu0 %99
    %vm101 = vcmp.eq.s32.totalorder %v65, %v100
    %v102 = vsel %vm101, 1, 0
    %v103 = vcvt.s32.f32 %v102
    %104 = vset.pattern.permute.xlu0 2
    %105 = vperm.xlu0 %104, %v62
    %v106 = vpop.permute.xlu0 %105
    %v108 = vsel %vm66, %v106, %v103
    %109 = vst.msk [vmem:[#allocation2 + $0x8] sm:$0xff] %vm79, %v108
    %110 = vset.pattern.permute.xlu0 3
    %111 = vperm.xlu0 %110, %v61
    %v112 = vpop.permute.xlu0 %111
    %vm113 = vcmp.eq.s32.totalorder %v65, %v112
    %v114 = vsel %vm113, 1, 0
    %v115 = vcvt.s32.f32 %v114
    %116 = vset.pattern.permute.xlu0 3
    %117 = vperm.xlu0 %116, %v62
    %v118 = vpop.permute.xlu0 %117
    %v120 = vsel %vm66, %v118, %v115
    %122 = vrot.lane.b32.xlu0 %v120, 64
    %v123 = vpop.permute.xlu0 %122
    %125 = vst.msk [vmem:[#allocation2 + $0x8] sm:$0xff] %vm96, %v123
    %126 = vset.pattern.permute.xlu0 4
    %127 = vperm.xlu0 %126, %v61
    %v128 = vpop.permute.xlu0 %127
    %vm129 = vcmp.eq.s32.totalorder %v65, %v128
    %v130 = vsel %vm129, 1, 0
    %v131 = vcvt.s32.f32 %v130
    %132 = vset.pattern.permute.xlu0 4
    %133 = vperm.xlu0 %132, %v62
    %v134 = vpop.permute.xlu0 %133
    %v136 = vsel %vm66, %v134, %v131
    %137 = vst.msk [vmem:[#allocation2 + $0x10] sm:$0xff] %vm79, %v136
    %138 = vset.pattern.permute.xlu0 5
    %139 = vperm.xlu0 %138, %v61
    %v140 = vpop.permute.xlu0 %139
    %vm141 = vcmp.eq.s32.totalorder %v65, %v140
    %v142 = vsel %vm141, 1, 0
    %v143 = vcvt.s32.f32 %v142
    %144 = vset.pattern.permute.xlu0 5
    %145 = vperm.xlu0 %144, %v62
    %v146 = vpop.permute.xlu0 %145
    %v148 = vsel %vm66, %v146, %v143
    %150 = vrot.lane.b32.xlu0 %v148, 64
    %v151 = vpop.permute.xlu0 %150
    %153 = vst.msk [vmem:[#allocation2 + $0x10] sm:$0xff] %vm96, %v151
    %154 = vset.pattern.permute.xlu0 6
    %155 = vperm.xlu0 %154, %v61
    %v156 = vpop.permute.xlu0 %155
    %vm157 = vcmp.eq.s32.totalorder %v65, %v156
    %v158 = vsel %vm157, 1, 0
    %v159 = vcvt.s32.f32 %v158
    %160 = vset.pattern.permute.xlu0 6
    %161 = vperm.xlu0 %160, %v62
    %v162 = vpop.permute.xlu0 %161
    %v164 = vsel %vm66, %v162, %v159
    %165 = vst.msk [vmem:[#allocation2 + $0x18] sm:$0xff] %vm79, %v164
    %166 = vset.pattern.permute.xlu0 7
    %167 = vperm.xlu0 %166, %v61
    %v168 = vpop.permute.xlu0 %167
    %vm169 = vcmp.eq.s32.totalorder %v65, %v168
    %v170 = vsel %vm169, 1, 0
    %v171 = vcvt.s32.f32 %v170
    %172 = vset.pattern.permute.xlu0 7
    %173 = vperm.xlu0 %172, %v62
    %v174 = vpop.permute.xlu0 %173
    %v176 = vsel %vm66, %v174, %v171
    %178 = vrot.lane.b32.xlu0 %v176, 64
    %v179 = vpop.permute.xlu0 %178
    %181 = vst.msk [vmem:[#allocation2 + $0x18] sm:$0xff] %vm96, %v179
    %182 = vset.pattern.permute.xlu0 8
    %183 = vperm.xlu0 %182, %v61
    %v184 = vpop.permute.xlu0 %183
    %vm185 = vcmp.eq.s32.totalorder %v65, %v184
    %v186 = vsel %vm185, 1, 0
    %v187 = vcvt.s32.f32 %v186
    %188 = vset.pattern.permute.xlu0 8
    %189 = vperm.xlu0 %188, %v62
    %v190 = vpop.permute.xlu0 %189
    %v192 = vsel %vm66, %v190, %v187
    %193 = vst.msk [vmem:[#allocation2 + $0x20] sm:$0xff] %vm79, %v192
    %194 = vset.pattern.permute.xlu0 9
    %195 = vperm.xlu0 %194, %v61
    %v196 = vpop.permute.xlu0 %195
    %vm197 = vcmp.eq.s32.totalorder %v65, %v196
    %v198 = vsel %vm197, 1, 0
    %v199 = vcvt.s32.f32 %v198
    %200 = vset.pattern.permute.xlu0 9
    %201 = vperm.xlu0 %200, %v62
    %v202 = vpop.permute.xlu0 %201
    %v204 = vsel %vm66, %v202, %v199
    %206 = vrot.lane.b32.xlu0 %v204, 64
    %v207 = vpop.permute.xlu0 %206
    %209 = vst.msk [vmem:[#allocation2 + $0x20] sm:$0xff] %vm96, %v207
    %210 = vset.pattern.permute.xlu0 10
    %211 = vperm.xlu0 %210, %v61
    %v212 = vpop.permute.xlu0 %211
    %vm213 = vcmp.eq.s32.totalorder %v65, %v212
    %v214 = vsel %vm213, 1, 0
    %v215 = vcvt.s32.f32 %v214
    %216 = vset.pattern.permute.xlu0 10
    %217 = vperm.xlu0 %216, %v62
    %v218 = vpop.permute.xlu0 %217
    %v220 = vsel %vm66, %v218, %v215
    %221 = vst.msk [vmem:[#allocation2 + $0x28] sm:$0xff] %vm79, %v220
    %222 = vset.pattern.permute.xlu0 11
    %223 = vperm.xlu0 %222, %v61
    %v224 = vpop.permute.xlu0 %223
    %vm225 = vcmp.eq.s32.totalorder %v65, %v224
    %v226 = vsel %vm225, 1, 0
    %v227 = vcvt.s32.f32 %v226
    %228 = vset.pattern.permute.xlu0 11
    %229 = vperm.xlu0 %228, %v62
    %v230 = vpop.permute.xlu0 %229
    %v232 = vsel %vm66, %v230, %v227
    %234 = vrot.lane.b32.xlu0 %v232, 64
    %v235 = vpop.permute.xlu0 %234
    %237 = vst.msk [vmem:[#allocation2 + $0x28] sm:$0xff] %vm96, %v235
    %v238 = vld [vmem:[#allocation2] sm:$0xff]
    %v239 = vld [vmem:[#allocation2 + $0x8] sm:$0xff]
    %v240 = vld [vmem:[#allocation2 + $0x10] sm:$0xff]
    %v241 = vld [vmem:[#allocation2 + $0x18] sm:$0xff]
    %v242 = vld [vmem:[#allocation2 + $0x20] sm:$0xff]
    %v243 = vld [vmem:[#allocation2 + $0x28] sm:$0xff]
    %v244 = vpack.c.bf16 %v238, %v238
    %v245 = vpack.c.bf16 %v239, %v239
    %v246 = vpack.c.bf16 %v240, %v240
    %v247 = vpack.c.bf16 %v241, %v241
    %v248 = vpack.c.bf16 %v242, %v242
    %v249 = vpack.c.bf16 %v243, %v243
    %v250 = vld [vmem:[#allocation6] sm:$0xf]
    %v251 = vld [vmem:[#allocation6 + $0x4] sm:$0xf]
    %v252 = vld [vmem:[#allocation6 + $0x8] sm:$0xf]
    %v253 = vld [vmem:[#allocation6 + $0xc] sm:$0xf]
    %v254 = vld [vmem:[#allocation6 + $0x10] sm:$0xf]
    %v255 = vld [vmem:[#allocation6 + $0x14] sm:$0xf]
    %v256 = vld [vmem:[#allocation6 + $0x18] sm:$0xf]
    %v257 = vld [vmem:[#allocation6 + $0x1c] sm:$0xf]
    %v258 = vld [vmem:[#allocation6 + $0x20] sm:$0xf]
    %v259 = vld [vmem:[#allocation6 + $0x24] sm:$0xf]
    %v260 = vld [vmem:[#allocation6 + $0x28] sm:$0xf]
    %v261 = vld [vmem:[#allocation6 + $0x2c] sm:$0xf]
    %v262 = vld [vmem:[#allocation6 + $0x30] sm:$0xf]
    %v263 = vld [vmem:[#allocation6 + $0x34] sm:$0xf]
    %v264 = vld [vmem:[#allocation6 + $0x38] sm:$0xf]
    %v265 = vld [vmem:[#allocation6 + $0x3c] sm:$0xf]
    %v266 = vld [vmem:[#allocation6 + $0x40] sm:$0xf]
    %v267 = vld [vmem:[#allocation6 + $0x44] sm:$0xf]
    %v268 = vld [vmem:[#allocation6 + $0x48] sm:$0xf]
    %v269 = vld [vmem:[#allocation6 + $0x4c] sm:$0xf]
    %v270 = vld [vmem:[#allocation6 + $0x50] sm:$0xf]
    %v271 = vld [vmem:[#allocation6 + $0x54] sm:$0xf]
    %v272 = vld [vmem:[#allocation6 + $0x58] sm:$0xf]
    %v273 = vld [vmem:[#allocation6 + $0x5c] sm:$0xf]
    %v274 = vld [vmem:[#allocation6 + $0x60] sm:$0xf]
    %v275 = vld [vmem:[#allocation6 + $0x64] sm:$0xf]
    %v276 = vld [vmem:[#allocation6 + $0x68] sm:$0xf]
    %v277 = vld [vmem:[#allocation6 + $0x6c] sm:$0xf]
    %v278 = vld [vmem:[#allocation6 + $0x70] sm:$0xf]
    %v279 = vld [vmem:[#allocation6 + $0x74] sm:$0xf]
    %v280 = vld [vmem:[#allocation6 + $0x78] sm:$0xf]
    %v281 = vld [vmem:[#allocation6 + $0x7c] sm:$0xf]
    %v282 = vld [vmem:[#allocation6 + $0x80] sm:$0xf]
    %v283 = vld [vmem:[#allocation6 + $0x84] sm:$0xf]
    %v284 = vld [vmem:[#allocation6 + $0x88] sm:$0xf]
    %v285 = vld [vmem:[#allocation6 + $0x8c] sm:$0xf]
    %v286 = vld [vmem:[#allocation6 + $0x90] sm:$0xf]
    %v287 = vld [vmem:[#allocation6 + $0x94] sm:$0xf]
    %v288 = vld [vmem:[#allocation6 + $0x98] sm:$0xf]
    %v289 = vld [vmem:[#allocation6 + $0x9c] sm:$0xf]
    %v290 = vld [vmem:[#allocation6 + $0xa0] sm:$0xf]
    %v291 = vld [vmem:[#allocation6 + $0xa4] sm:$0xf]
    %v292 = vld [vmem:[#allocation6 + $0xa8] sm:$0xf]
    %v293 = vld [vmem:[#allocation6 + $0xac] sm:$0xf]
    %v294 = vld [vmem:[#allocation6 + $0xb0] sm:$0xf]
    %v295 = vld [vmem:[#allocation6 + $0xb4] sm:$0xf]
    %v296 = vld [vmem:[#allocation6 + $0xb8] sm:$0xf]
    %v297 = vld [vmem:[#allocation6 + $0xbc] sm:$0xf]
    %v298 = vld [vmem:[#allocation6 + $0xc0] sm:$0xf]
    %v299 = vld [vmem:[#allocation6 + $0xc4] sm:$0xf]
    %v300 = vld [vmem:[#allocation6 + $0xc8] sm:$0xf]
    %v301 = vld [vmem:[#allocation6 + $0xcc] sm:$0xf]
    %v302 = vld [vmem:[#allocation6 + $0xd0] sm:$0xf]
    %v303 = vld [vmem:[#allocation6 + $0xd4] sm:$0xf]
    %v304 = vld [vmem:[#allocation6 + $0xd8] sm:$0xf]
    %v305 = vld [vmem:[#allocation6 + $0xdc] sm:$0xf]
    %v306 = vld [vmem:[#allocation6 + $0xe0] sm:$0xf]
    %v307 = vld [vmem:[#allocation6 + $0xe4] sm:$0xf]
    %v308 = vld [vmem:[#allocation6 + $0xe8] sm:$0xf]
    %v309 = vld [vmem:[#allocation6 + $0xec] sm:$0xf]
    %v310 = vld [vmem:[#allocation6 + $0xf0] sm:$0xf]
    %v311 = vld [vmem:[#allocation6 + $0xf4] sm:$0xf]
    %v312 = vld [vmem:[#allocation6 + $0xf8] sm:$0xf]
    %v313 = vld [vmem:[#allocation6 + $0xfc] sm:$0xf]
    %v314 = vld [vmem:[#allocation6 + $0x100] sm:$0xf]
    %v315 = vld [vmem:[#allocation6 + $0x104] sm:$0xf]
    %v316 = vld [vmem:[#allocation6 + $0x108] sm:$0xf]
    %v317 = vld [vmem:[#allocation6 + $0x10c] sm:$0xf]
    %v318 = vld [vmem:[#allocation6 + $0x110] sm:$0xf]
    %v319 = vld [vmem:[#allocation6 + $0x114] sm:$0xf]
    %v320 = vld [vmem:[#allocation6 + $0x118] sm:$0xf]
    %v321 = vld [vmem:[#allocation6 + $0x11c] sm:$0xf]
    %v322 = vld [vmem:[#allocation6 + $0x120] sm:$0xf]
    %v323 = vld [vmem:[#allocation6 + $0x124] sm:$0xf]
    %v324 = vld [vmem:[#allocation6 + $0x128] sm:$0xf]
    %v325 = vld [vmem:[#allocation6 + $0x12c] sm:$0xf]
    %v326 = vld [vmem:[#allocation6 + $0x130] sm:$0xf]
    %v327 = vld [vmem:[#allocation6 + $0x134] sm:$0xf]
    %v328 = vld [vmem:[#allocation6 + $0x138] sm:$0xf]
    %v329 = vld [vmem:[#allocation6 + $0x13c] sm:$0xf]
    %v330 = vld [vmem:[#allocation6 + $0x140] sm:$0xf]
    %v331 = vld [vmem:[#allocation6 + $0x144] sm:$0xf]
    %v332 = vld [vmem:[#allocation6 + $0x148] sm:$0xf]
    %v333 = vld [vmem:[#allocation6 + $0x14c] sm:$0xf]
    %v334 = vld [vmem:[#allocation6 + $0x150] sm:$0xf]
    %v335 = vld [vmem:[#allocation6 + $0x154] sm:$0xf]
    %v336 = vld [vmem:[#allocation6 + $0x158] sm:$0xf]
    %v337 = vld [vmem:[#allocation6 + $0x15c] sm:$0xf]
    %v338 = vld [vmem:[#allocation6 + $0x160] sm:$0xf]
    %v339 = vld [vmem:[#allocation6 + $0x164] sm:$0xf]
    %v340 = vld [vmem:[#allocation6 + $0x168] sm:$0xf]
    %v341 = vld [vmem:[#allocation6 + $0x16c] sm:$0xf]
    %v342 = vld [vmem:[#allocation6 + $0x170] sm:$0xf]
    %v343 = vld [vmem:[#allocation6 + $0x174] sm:$0xf]
    %v344 = vld [vmem:[#allocation6 + $0x178] sm:$0xf]
    %v345 = vld [vmem:[#allocation6 + $0x17c] sm:$0xf]
    %v346 = vld [vmem:[#allocation8] sm:$0xff]
    %v347 = vld [vmem:[#allocation8 + $0x8] sm:$0xff]
    %v348 = vld [vmem:[#allocation8 + $0x10] sm:$0xff]
    %v349 = vld [vmem:[#allocation8 + $0x18] sm:$0xff]
    %v350 = vld [vmem:[#allocation8 + $0x20] sm:$0xff]
    %v351 = vld [vmem:[#allocation8 + $0x28] sm:$0xff]
    %v352 = vld [vmem:[#allocation8 + $0x30] sm:$0xff]
    %v353 = vld [vmem:[#allocation8 + $0x38] sm:$0xff]
    %v354 = vld [vmem:[#allocation8 + $0x40] sm:$0x1]
    %v355 = vld [vmem:[#allocation8 + $0x48] sm:$0x1]
    %v356 = vld [vmem:[#allocation8 + $0x50] sm:$0x1]
    %v357 = vld [vmem:[#allocation8 + $0x58] sm:$0x1]
    %v358 = vlaneseq
    %v359 = vshrl.u32 %v358, 7
    %v360 = vsub.s32 0, %v359
    %v361 = vrot.slane %v355, %v360
    %v458 = vunpack.c.l.b16 %v250
    %v459 = vunpack.c.l.b16 %v251
    %v460 = vunpack.c.l.b16 %v252
    %v461 = vunpack.c.l.b16 %v253
    %v462 = vunpack.c.l.b16 %v254
    %v463 = vunpack.c.l.b16 %v255
    %v464 = vunpack.c.l.b16 %v256
    %v465 = vunpack.c.l.b16 %v257
    %v466 = vunpack.c.l.b16 %v258
    %v467 = vunpack.c.l.b16 %v259
    %v468 = vunpack.c.l.b16 %v260
    %v469 = vunpack.c.l.b16 %v261
    %v470 = vunpack.c.l.b16 %v262
    %v471 = vunpack.c.l.b16 %v263
    %v472 = vunpack.c.l.b16 %v264
    %v473 = vunpack.c.l.b16 %v265
    %v474 = vunpack.c.l.b16 %v266
    %v475 = vunpack.c.l.b16 %v267
    %v476 = vunpack.c.l.b16 %v268
    %v477 = vunpack.c.l.b16 %v269
    %v478 = vunpack.c.l.b16 %v270
    %v479 = vunpack.c.l.b16 %v271
    %v480 = vunpack.c.l.b16 %v272
    %v481 = vunpack.c.l.b16 %v273
    %v482 = vunpack.c.l.b16 %v274
    %v483 = vunpack.c.l.b16 %v275
    %v484 = vunpack.c.l.b16 %v276
    %v485 = vunpack.c.l.b16 %v277
    %v486 = vunpack.c.l.b16 %v278
    %v487 = vunpack.c.l.b16 %v279
    %v488 = vunpack.c.l.b16 %v280
    %v489 = vunpack.c.l.b16 %v281
    %v490 = vunpack.c.l.b16 %v282
    %v491 = vunpack.c.l.b16 %v283
    %v492 = vunpack.c.l.b16 %v284
    %v493 = vunpack.c.l.b16 %v285
    %v494 = vunpack.c.l.b16 %v286
    %v495 = vunpack.c.l.b16 %v287
    %v496 = vunpack.c.l.b16 %v288
    %v497 = vunpack.c.l.b16 %v289
    %v498 = vunpack.c.l.b16 %v290
    %v499 = vunpack.c.l.b16 %v291
    %v500 = vunpack.c.l.b16 %v292
    %v501 = vunpack.c.l.b16 %v293
    %v502 = vunpack.c.l.b16 %v294
    %v503 = vunpack.c.l.b16 %v295
    %v504 = vunpack.c.l.b16 %v296
    %v505 = vunpack.c.l.b16 %v297
    %v506 = vunpack.c.l.b16 %v298
    %v507 = vunpack.c.l.b16 %v299
    %v508 = vunpack.c.l.b16 %v300
    %v509 = vunpack.c.l.b16 %v301
    %v510 = vunpack.c.l.b16 %v302
    %v511 = vunpack.c.l.b16 %v303
    %v512 = vunpack.c.l.b16 %v304
    %v513 = vunpack.c.l.b16 %v305
    %v514 = vunpack.c.l.b16 %v306
    %v515 = vunpack.c.l.b16 %v307
    %v516 = vunpack.c.l.b16 %v308
    %v517 = vunpack.c.l.b16 %v309
    %v518 = vunpack.c.l.b16 %v310
    %v519 = vunpack.c.l.b16 %v311
    %v520 = vunpack.c.l.b16 %v312
    %v521 = vunpack.c.l.b16 %v313
    %v522 = vunpack.c.l.b16 %v314
    %v523 = vunpack.c.l.b16 %v315
    %v524 = vunpack.c.l.b16 %v316
    %v525 = vunpack.c.l.b16 %v317
    %v526 = vunpack.c.l.b16 %v318
    %v527 = vunpack.c.l.b16 %v319
    %v528 = vunpack.c.l.b16 %v320
    %v529 = vunpack.c.l.b16 %v321
    %v530 = vunpack.c.l.b16 %v322
    %v531 = vunpack.c.l.b16 %v323
    %v532 = vunpack.c.l.b16 %v324
    %v533 = vunpack.c.l.b16 %v325
    %v534 = vunpack.c.l.b16 %v326
    %v535 = vunpack.c.l.b16 %v327
    %v536 = vunpack.c.l.b16 %v328
    %v537 = vunpack.c.l.b16 %v329
    %v538 = vunpack.c.l.b16 %v330
    %v539 = vunpack.c.l.b16 %v331
    %v540 = vunpack.c.l.b16 %v332
    %v541 = vunpack.c.l.b16 %v333
    %v542 = vunpack.c.l.b16 %v334
    %v543 = vunpack.c.l.b16 %v335
    %v544 = vunpack.c.l.b16 %v336
    %v545 = vunpack.c.l.b16 %v337
    %v546 = vunpack.c.l.b16 %v338
    %v547 = vunpack.c.l.b16 %v339
    %v548 = vunpack.c.l.b16 %v340
    %v549 = vunpack.c.l.b16 %v341
    %v550 = vunpack.c.l.b16 %v342
    %v551 = vunpack.c.l.b16 %v343
    %v552 = vunpack.c.l.b16 %v344
    %v553 = vunpack.c.l.b16 %v345
    %v554 = vpack.c.b16 %v459, %v458
    %v555 = vpack.c.b16 %v461, %v460
    %v556 = vpack.c.b16 %v463, %v462
    %v557 = vpack.c.b16 %v465, %v464
    %v558 = vpack.c.b16 %v467, %v466
    %v559 = vpack.c.b16 %v469, %v468
    %v560 = vpack.c.b16 %v471, %v470
    %v561 = vpack.c.b16 %v473, %v472
    %v562 = vpack.c.b16 %v475, %v474
    %v563 = vpack.c.b16 %v477, %v476
    %v564 = vpack.c.b16 %v479, %v478
    %v565 = vpack.c.b16 %v481, %v480
    %v566 = vpack.c.b16 %v483, %v482
    %v567 = vpack.c.b16 %v485, %v484
    %v568 = vpack.c.b16 %v487, %v486
    %v569 = vpack.c.b16 %v489, %v488
    %v570 = vpack.c.b16 %v491, %v490
    %v571 = vpack.c.b16 %v493, %v492
    %v572 = vpack.c.b16 %v495, %v494
    %v573 = vpack.c.b16 %v497, %v496
    %v574 = vpack.c.b16 %v499, %v498
    %v575 = vpack.c.b16 %v501, %v500
    %v576 = vpack.c.b16 %v503, %v502
    %v577 = vpack.c.b16 %v505, %v504
    %v578 = vpack.c.b16 %v507, %v506
    %v579 = vpack.c.b16 %v509, %v508
    %v580 = vpack.c.b16 %v511, %v510
    %v581 = vpack.c.b16 %v513, %v512
    %v582 = vpack.c.b16 %v515, %v514
    %v583 = vpack.c.b16 %v517, %v516
    %v584 = vpack.c.b16 %v519, %v518
    %v585 = vpack.c.b16 %v521, %v520
    %v586 = vpack.c.b16 %v523, %v522
    %v587 = vpack.c.b16 %v525, %v524
    %v588 = vpack.c.b16 %v527, %v526
    %v589 = vpack.c.b16 %v529, %v528
    %v590 = vpack.c.b16 %v531, %v530
    %v591 = vpack.c.b16 %v533, %v532
    %v592 = vpack.c.b16 %v535, %v534
    %v593 = vpack.c.b16 %v537, %v536
    %v594 = vpack.c.b16 %v539, %v538
    %v595 = vpack.c.b16 %v541, %v540
    %v596 = vpack.c.b16 %v543, %v542
    %v597 = vpack.c.b16 %v545, %v544
    %v598 = vpack.c.b16 %v547, %v546
    %v599 = vpack.c.b16 %v549, %v548
    %v600 = vpack.c.b16 %v551, %v550
    %v601 = vpack.c.b16 %v553, %v552
    %650 = vmatprep.subr.bf16.mxu0 0
    %651 = vmatpush1.bf16.msra.mxu0 %v561
    %652 = vmatprep.subr.bf16.mxu0 0
    %653 = vmatpush1.bf16.msra.mxu0 %v560
    %654 = vmatprep.subr.bf16.mxu0 0
    %655 = vmatpush1.bf16.msra.mxu0 %v559
    %656 = vmatprep.subr.bf16.mxu0 0
    %657 = vmatpush1.bf16.msra.mxu0 %v558
    %658 = vmatprep.subr.bf16.mxu0 0
    %659 = vmatpush1.bf16.msra.mxu0 %v557
    %660 = vmatprep.subr.bf16.mxu0 0
    %661 = vmatpush1.bf16.msra.mxu0 %v556
    %662 = vmatprep.subr.bf16.mxu0 0
    %663 = vmatpush1.bf16.msra.mxu0 %v555
    %664 = vmatprep.subr.bf16.mxu0 0
    %665 = vmatpush1.bf16.msra.mxu0 %v554
    %666 = vmatprep.subr.bf16.mxu0 0
    %667 = vmatpush2.bf16.msra.mxu0 %v569
    %668 = vmatprep.subr.bf16.mxu0 0
    %669 = vmatpush2.bf16.msra.mxu0 %v568
    %670 = vmatprep.subr.bf16.mxu0 0
    %671 = vmatpush2.bf16.msra.mxu0 %v567
    %672 = vmatprep.subr.bf16.mxu0 0
    %673 = vmatpush2.bf16.msra.mxu0 %v566
    %674 = vmatprep.subr.bf16.mxu0 0
    %675 = vmatpush2.bf16.msra.mxu0 %v565
    %676 = vmatprep.subr.bf16.mxu0 0
    %677 = vmatpush2.bf16.msra.mxu0 %v564
    %678 = vmatprep.subr.bf16.mxu0 0
    %679 = vmatpush2.bf16.msra.mxu0 %v563
    %680 = vmatprep.subr.bf16.mxu0 0
    %681 = vmatpush2.bf16.msra.mxu0 %v562
    %682 = vmatprep.mubr.bf16.mxu0 %v245
    %683 = vmatmul.mubr.bf16.gmra.mxu0 %v244
    %v684 = vpop.f32.mrf.mxu0
    %v685 = vadd.f32 %v361, %v684
    %v686 = vpop.f32.mrf.mxu0
    %v687 = vpop.f32.mrf.mxu0
    %v688 = vpop.f32.mrf.mxu0
    %689 = vdwg.mxu0
    %690 = vmatprep.subr.bf16.mxu0 0
    %691 = vmatpush1.bf16.msra.mxu0 %v577
    %692 = vmatprep.subr.bf16.mxu0 0
    %693 = vmatpush1.bf16.msra.mxu0 %v576
    %694 = vmatprep.subr.bf16.mxu0 0
    %695 = vmatpush1.bf16.msra.mxu0 %v575
    %696 = vmatprep.subr.bf16.mxu0 0
    %697 = vmatpush1.bf16.msra.mxu0 %v574
    %698 = vmatprep.subr.bf16.mxu0 0
    %699 = vmatpush1.bf16.msra.mxu0 %v573
    %700 = vmatprep.subr.bf16.mxu0 0
    %701 = vmatpush1.bf16.msra.mxu0 %v572
    %702 = vmatprep.subr.bf16.mxu0 0
    %703 = vmatpush1.bf16.msra.mxu0 %v571
    %704 = vmatprep.subr.bf16.mxu0 0
    %705 = vmatpush1.bf16.msra.mxu0 %v570
    %706 = vmatprep.subr.bf16.mxu0 0
    %707 = vmatpush2.bf16.msra.mxu0 %v585
    %708 = vmatprep.subr.bf16.mxu0 0
    %709 = vmatpush2.bf16.msra.mxu0 %v584
    %710 = vmatprep.subr.bf16.mxu0 0
    %711 = vmatpush2.bf16.msra.mxu0 %v583
    %712 = vmatprep.subr.bf16.mxu0 0
    %713 = vmatpush2.bf16.msra.mxu0 %v582
    %714 = vmatprep.subr.bf16.mxu0 0
    %715 = vmatpush2.bf16.msra.mxu0 %v581
    %716 = vmatprep.subr.bf16.mxu0 0
    %717 = vmatpush2.bf16.msra.mxu0 %v580
    %718 = vmatprep.subr.bf16.mxu0 0
    %719 = vmatpush2.bf16.msra.mxu0 %v579
    %720 = vmatprep.subr.bf16.mxu0 0
    %721 = vmatpush2.bf16.msra.mxu0 %v578
    %722 = vmatprep.mubr.bf16.mxu0 %v247
    %723 = vmatmul.mubr.bf16.gmra.mxu0 %v246
    %v724 = vpop.f32.mrf.mxu0
    %v725 = vadd.f32 %v685, %v724
    %v726 = vpop.f32.mrf.mxu0
    %v727 = vpop.f32.mrf.mxu0
    %v728 = vpop.f32.mrf.mxu0
    %729 = vdwg.mxu0
    %730 = vmatprep.subr.bf16.mxu0 0
    %731 = vmatpush1.bf16.msra.mxu0 %v593
    %732 = vmatprep.subr.bf16.mxu0 0
    %733 = vmatpush1.bf16.msra.mxu0 %v592
    %734 = vmatprep.subr.bf16.mxu0 0
    %735 = vmatpush1.bf16.msra.mxu0 %v591
    %736 = vmatprep.subr.bf16.mxu0 0
    %737 = vmatpush1.bf16.msra.mxu0 %v590
    %738 = vmatprep.subr.bf16.mxu0 0
    %739 = vmatpush1.bf16.msra.mxu0 %v589
    %740 = vmatprep.subr.bf16.mxu0 0
    %741 = vmatpush1.bf16.msra.mxu0 %v588
    %742 = vmatprep.subr.bf16.mxu0 0
    %743 = vmatpush1.bf16.msra.mxu0 %v587
    %744 = vmatprep.subr.bf16.mxu0 0
    %745 = vmatpush1.bf16.msra.mxu0 %v586
    %746 = vmatprep.subr.bf16.mxu0 0
    %747 = vmatpush2.bf16.msra.mxu0 %v601
    %748 = vmatprep.subr.bf16.mxu0 0
    %749 = vmatpush2.bf16.msra.mxu0 %v600
    %750 = vmatprep.subr.bf16.mxu0 0
    %751 = vmatpush2.bf16.msra.mxu0 %v599
    %752 = vmatprep.subr.bf16.mxu0 0
    %753 = vmatpush2.bf16.msra.mxu0 %v598
    %754 = vmatprep.subr.bf16.mxu0 0
    %755 = vmatpush2.bf16.msra.mxu0 %v597
    %756 = vmatprep.subr.bf16.mxu0 0
    %757 = vmatpush2.bf16.msra.mxu0 %v596
    %758 = vmatprep.subr.bf16.mxu0 0
    %759 = vmatpush2.bf16.msra.mxu0 %v595
    %760 = vmatprep.subr.bf16.mxu0 0
    %761 = vmatpush2.bf16.msra.mxu0 %v594
    %762 = vmatprep.mubr.bf16.mxu0 %v249
    %763 = vmatmul.mubr.bf16.gmra.mxu0 %v248
    %v764 = vpop.f32.mrf.mxu0
    %v765 = vadd.f32 %v725, %v764
    %v766 = vpop.f32.mrf.mxu0
    %v767 = vpop.f32.mrf.mxu0
    %v768 = vpop.f32.mrf.mxu0
    %769 = vdwg.mxu0
    %v770 = vmax.f32 %v765, 0.0
    %772 = vset.pattern.permute.xlu0 0
    %773 = vperm.xlu0 %772, %v63
    %v774 = vpop.permute.xlu0 %773
    %v776 = vlaneseq
    %v777 = vshrl.u32 %v776, 7
    %v778 = vsub.s32 0, %v777
    %v779 = vrot.slane %v354, %v778
    %v780 = vmul.f32 %v774, %v779
    %vm781 = vcmask 261120
    %v783 = vsel %vm781, %v770, 0
    %785 = vmatprep.subr.mxu0 0.0
    %786 = vmatpush1.msra.mxu0 0.0
    %787 = vmatprep.subr.mxu0 0.0
    %788 = vmatpush1.msra.mxu0 0.0
    %789 = vmatprep.subr.mxu0 0.0
    %790 = vmatpush1.msra.mxu0 0.0
    %791 = vmatprep.subr.mxu0 0.0
    %792 = vmatpush1.msra.mxu0 0.0
    %793 = vmatprep.subr.mxu0 0.0
    %794 = vmatpush1.msra.mxu0 0.0
    %795 = vmatprep.subr.mxu0 0.0
    %796 = vmatpush1.msra.mxu0 0.0
    %797 = vmatprep.subr.mxu0 0.0
    %798 = vmatpush1.msra.mxu0 0.0
    %799 = vmatprep.subr.mxu0 0.0
    %800 = vmatpush1.msra.mxu0 0.0
    %801 = vmatprep.subr.mxu0 0.0
    %802 = vmatpush1.msra.mxu0 0.0
    %803 = vmatprep.subr.mxu0 0.0
    %804 = vmatpush1.msra.mxu0 0.0
    %805 = vmatprep.subr.mxu0 0.0
    %806 = vmatpush1.msra.mxu0 0.0
    %807 = vmatprep.subr.mxu0 0.0
    %808 = vmatpush1.msra.mxu0 0.0
    %809 = vmatprep.subr.mxu0 0.0
    %810 = vmatpush1.msra.mxu0 %v349
    %811 = vmatprep.subr.mxu0 0.0
    %812 = vmatpush1.msra.mxu0 %v348
    %813 = vmatprep.subr.mxu0 0.0
    %814 = vmatpush1.msra.mxu0 %v347
    %815 = vmatprep.subr.mxu0 0.0
    %816 = vmatpush1.msra.mxu0 %v346
    %817 = vmatprep.subr.mxu0 0.0
    %818 = vmatpush2.msra.mxu0 0.0
    %819 = vmatprep.subr.mxu0 0.0
    %820 = vmatpush2.msra.mxu0 0.0
    %821 = vmatprep.subr.mxu0 0.0
    %822 = vmatpush2.msra.mxu0 0.0
    %823 = vmatprep.subr.mxu0 0.0
    %824 = vmatpush2.msra.mxu0 0.0
    %825 = vmatprep.subr.mxu0 0.0
    %826 = vmatpush2.msra.mxu0 0.0
    %827 = vmatprep.subr.mxu0 0.0
    %828 = vmatpush2.msra.mxu0 0.0
    %829 = vmatprep.subr.mxu0 0.0
    %830 = vmatpush2.msra.mxu0 0.0
    %831 = vmatprep.subr.mxu0 0.0
    %832 = vmatpush2.msra.mxu0 0.0
    %833 = vmatprep.subr.mxu0 0.0
    %834 = vmatpush2.msra.mxu0 0.0
    %835 = vmatprep.subr.mxu0 0.0
    %836 = vmatpush2.msra.mxu0 0.0
    %837 = vmatprep.subr.mxu0 0.0
    %838 = vmatpush2.msra.mxu0 0.0
    %839 = vmatprep.subr.mxu0 0.0
    %840 = vmatpush2.msra.mxu0 0.0
    %841 = vmatprep.subr.mxu0 0.0
    %842 = vmatpush2.msra.mxu0 0.0
    %843 = vmatprep.subr.mxu0 0.0
    %844 = vmatpush2.msra.mxu0 0.0
    %845 = vmatprep.subr.mxu0 0.0
    %846 = vmatpush2.msra.mxu0 0.0
    %847 = vmatprep.subr.mxu0 0.0
    %848 = vmatpush2.msra.mxu0 0.0
    %849 = vmatprep.mubr.f32.mxu0 0.0
    %850 = vmatmul.mubr.f32.gmra.mxu0 %v783
    %v851 = vpop.f32.mrf.mxu0
    %v852 = vadd.f32 %v780, %v851
    %v853 = vpop.f32.mrf.mxu0
    %854 = vdwg.mxu0
    %v855 = vlaneseq
    %v856 = vshrl.u32 %v855, 7
    %v857 = vsub.s32 0, %v856
    %v858 = vrot.slane %v356, %v857
    %v859 = vadd.f32 %v852, %v858
    %v860 = vmax.f32 %v859, 0.0
    %v861 = vlaneseq
    %v862 = vshrl.u32 %v861, 7
    %v863 = vsub.s32 0, %v862
    %v864 = vrot.slane %v357, %v863
    %v866 = vsel %vm781, %v860, 0
    %868 = vmatprep.subr.mxu0 0.0
    %869 = vmatpush1.msra.mxu0 0.0
    %870 = vmatprep.subr.mxu0 0.0
    %871 = vmatpush1.msra.mxu0 0.0
    %872 = vmatprep.subr.mxu0 0.0
    %873 = vmatpush1.msra.mxu0 0.0
    %874 = vmatprep.subr.mxu0 0.0
    %875 = vmatpush1.msra.mxu0 0.0
    %876 = vmatprep.subr.mxu0 0.0
    %877 = vmatpush1.msra.mxu0 0.0
    %878 = vmatprep.subr.mxu0 0.0
    %879 = vmatpush1.msra.mxu0 0.0
    %880 = vmatprep.subr.mxu0 0.0
    %881 = vmatpush1.msra.mxu0 0.0
    %882 = vmatprep.subr.mxu0 0.0
    %883 = vmatpush1.msra.mxu0 0.0
    %884 = vmatprep.subr.mxu0 0.0
    %885 = vmatpush1.msra.mxu0 0.0
    %886 = vmatprep.subr.mxu0 0.0
    %887 = vmatpush1.msra.mxu0 0.0
    %888 = vmatprep.subr.mxu0 0.0
    %889 = vmatpush1.msra.mxu0 0.0
    %890 = vmatprep.subr.mxu0 0.0
    %891 = vmatpush1.msra.mxu0 0.0
    %892 = vmatprep.subr.mxu0 0.0
    %893 = vmatpush1.msra.mxu0 %v353
    %894 = vmatprep.subr.mxu0 0.0
    %895 = vmatpush1.msra.mxu0 %v352
    %896 = vmatprep.subr.mxu0 0.0
    %897 = vmatpush1.msra.mxu0 %v351
    %898 = vmatprep.subr.mxu0 0.0
    %899 = vmatpush1.msra.mxu0 %v350
    %900 = vmatprep.subr.mxu0 0.0
    %901 = vmatpush2.msra.mxu0 0.0
    %902 = vmatprep.subr.mxu0 0.0
    %903 = vmatpush2.msra.mxu0 0.0
    %904 = vmatprep.subr.mxu0 0.0
    %905 = vmatpush2.msra.mxu0 0.0
    %906 = vmatprep.subr.mxu0 0.0
    %907 = vmatpush2.msra.mxu0 0.0
    %908 = vmatprep.subr.mxu0 0.0
    %909 = vmatpush2.msra.mxu0 0.0
    %910 = vmatprep.subr.mxu0 0.0
    %911 = vmatpush2.msra.mxu0 0.0
    %912 = vmatprep.subr.mxu0 0.0
    %913 = vmatpush2.msra.mxu0 0.0
    %914 = vmatprep.subr.mxu0 0.0
    %915 = vmatpush2.msra.mxu0 0.0
    %916 = vmatprep.subr.mxu0 0.0
    %917 = vmatpush2.msra.mxu0 0.0
    %918 = vmatprep.subr.mxu0 0.0
    %919 = vmatpush2.msra.mxu0 0.0
    %920 = vmatprep.subr.mxu0 0.0
    %921 = vmatpush2.msra.mxu0 0.0
    %922 = vmatprep.subr.mxu0 0.0
    %923 = vmatpush2.msra.mxu0 0.0
    %924 = vmatprep.subr.mxu0 0.0
    %925 = vmatpush2.msra.mxu0 0.0
    %926 = vmatprep.subr.mxu0 0.0
    %927 = vmatpush2.msra.mxu0 0.0
    %928 = vmatprep.subr.mxu0 0.0
    %929 = vmatpush2.msra.mxu0 0.0
    %930 = vmatprep.subr.mxu0 0.0
    %931 = vmatpush2.msra.mxu0 0.0
    %932 = vmatprep.mubr.f32.mxu0 0.0
    %933 = vmatmul.mubr.f32.gmra.mxu0 %v866
    %v934 = vpop.f32.mrf.mxu0
    %v935 = vadd.f32 %v864, %v934
    %v936 = vpop.f32.mrf.mxu0
    %937 = vdwg.mxu0
    %v938 = vsub.f32 0.0, %v935
    %v939 = vmul.f32 %v938, 1.442695
    %v940 = vpow.pop %v939
    %v941 = vadd.f32 %v940, 1.0
    %v942 = vrcp.pop %v941
    %v943 = vmul.f32 1.0, %v942
    %vm944 = vcmask 56320
    %945 = vst.msk [vmem:[#allocation9] sm:$0xff] %vm944, %v943
    // Predicated region
    $region34: #{forward.1} parent=1 // pred_check
      _
    $region35: #{forward.1} parent=1 // pred_check_branch
      %947 = sbr.rel (0) target = $region37
    $region36: #{forward.1} parent=1 // pred_region
      %s949 = ssub.s32 128, 128
      %950 = vsyncadd [#allocation5], %s949
      %s952 = sshll.u32 [#allocation9], 4
      %s953 = int_to_ptr.vmem [resolvable:$true] %s952
      %955 = dma.vmem_to_hbm [thread:$0]  %s953, 128, %s5, [#allocation5]
    $region37: #{forward.1} parent=1 // pred_fallthru
      _
    // Predicated region
    $region38: #{forward.1} parent=1 // pred_check
      _
    $region39: #{forward.1} parent=1 // pred_check_branch
      %957 = sbr.rel (0) target = $region41
    $region40: #{forward.1} parent=1 // pred_region
      %958 = dma.done [#allocation5], 128
    $region41: #{forward.1} parent=1 // pred_fallthru
      _
    %959 = vsyncpa [#allocation4], 1
    %960 = vsyncpa [#allocation7], 1
    %961 = vsyncpa [#allocation5], 1

</llo_original>
